<compile_context>
chip_gen: v6e
topology: v6e:2x2x1
jax: 0.10.0
libtpu: 0.0.40
codegen_flags: <defaults>
</compile_context>

<pallas_src>
import jax
import jax.numpy as jnp
from jax.experimental import pallas as pl
from jax.experimental.pallas import tpu as pltpu

_OUT_BLOCK_BUDGET = 8 << 20   # ~8 MiB output block per grid step
_IN_TILE_BUDGET = 8 << 20     # W tile cap (== out block when batch dim is squeezed)
_VMEM_LIMIT = 40 << 20        # 2*out + 2*in <= 32 MiB worst case, + headroom


def _pos_embed_kernel(w_ref, o_ref):
    # w_ref : (TS, TD) tile of W_pos            (3-D path)   or (1, F) flat row
    # o_ref : same shape as w_ref               (squeezed batch, straight copy)
    #         (B_TILE, TS, TD) / (B_TILE, 1, F) (packed batch, one broadcast)
    w = w_ref[...]
    if o_ref.shape == w.shape:
        o_ref[...] = w
    else:
        o_ref[...] = jnp.broadcast_to(w[None], o_ref.shape)


def _largest_divisor_multiple(dim: int, align: int, cap_elems: int):
    """Largest multiple of `align` that divides `dim` and is <= cap_elems (or None)."""
    if dim % align != 0:
        return None
    t = min(dim, max(align, (cap_elems // align) * align))
    t = (t // align) * align
    while t >= align:
        if dim % t == 0:
            return t
        t -= align
    return None


def _pick_batch_tile(batch: int, tile_bytes: int, budget: int) -> int:
    """Pack batch copies per grid step (amortizes per-step overhead) up to `budget` bytes."""
    bt = 1
    for cand in range(1, batch + 1):
        if batch % cand == 0 and cand * tile_bytes <= budget:
            bt = cand
    return bt


def pos_embed(tokens: jax.Array, w_pos: jax.Array, b_tile: int | None = None) -> jax.Array:
    """Replicates PosEmbed.forward: W_pos[:seq] repeated over batch."""
    batch, seq = tokens.shape
    n_ctx, d_model = w_pos.shape
    assert seq <= n_ctx, "sequence length exceeds n_ctx"

    itemsize = jnp.dtype(w_pos.dtype).itemsize
    flat = seq * d_model

    cost = pl.CostEstimate(
        flops=0,
        transcendentals=0,
        bytes_accessed=(batch * flat + flat) * itemsize,  # write out + read table once
    )

    # ---- Lane-density guard: narrow / non-128-multiple d_model ----------------
    # A last dim < 128 (or not a multiple of 128) lowers to masked partial stores
    # on the single vst slot.  Rewrite on a flattened last dim instead.
    if d_model % 128 != 0 and flat * itemsize <= _IN_TILE_BUDGET:
        if flat % 128 == 0:
            # No slice copy: block 0 of the flattened table covers exactly rows [0, seq).
            w_in = w_pos.reshape(1, n_ctx * d_model)
        else:
            # Fallback: full-extent block on the sliced view (exempt from (8,128) rule).
            w_in = w_pos[:seq, :].reshape(1, flat)

        bt = b_tile if b_tile is not None else _pick_batch_tile(batch, flat * itemsize,
                                                                _OUT_BLOCK_BUDGET)
        assert batch % bt == 0

        out_flat = pl.pallas_call(
            _pos_embed_kernel,
            out_shape=jax.ShapeDtypeStruct((batch, 1, flat), w_pos.dtype),
            grid_spec=pltpu.PrefetchScalarGridSpec(
                num_scalar_prefetch=0,
                grid=(batch // bt,),
                in_specs=[pl.BlockSpec((1, flat), lambda b: (0, 0))],
                out_specs=pl.BlockSpec((bt, 1, flat), lambda b: (b, 0, 0)),
            ),
            compiler_params=pltpu.CompilerParams(
                dimension_semantics=("parallel",),
                vmem_limit_bytes=_VMEM_LIMIT,
            ),
            cost_estimate=cost,
        )(w_in)
        # Contiguous reshape back to (batch, seq, d_model) is metadata-only.
        return out_flat.reshape(batch, seq, d_model)

    # ---- General 3-D tiled path ------------------------------------------------
    # Prefer full-d_model rows (long contiguous HBM writes); only split d_model
    # if even an 8-row slab would blow the tile budget.
    if 8 * d_model * itemsize <= _IN_TILE_BUDGET or d_model % 128 != 0:
        td = d_model
    else:
        td = _largest_divisor_multiple(d_model, 128, _IN_TILE_BUDGET // (8 * itemsize)) or d_model

    ts = _largest_divisor_multiple(seq, 8, max(8, _IN_TILE_BUDGET // (td * itemsize)))
    if ts is not None:
        # seq is 8-aligned: tile the UNSLICED table; index_map only touches blocks
        # inside the first `seq` rows, so no pre-kernel slice copy is needed.
        w_in = w_pos
    else:
        # seq not 8-aligned: full-extent seq block on a sliced view.
        # TODO(synk): pad/mask a remainder tile instead if seq*td*itemsize ever exceeds VMEM budget.
        ts = seq
        w_in = w_pos[:seq, :]

    tile_bytes = ts * td * itemsize
    if b_tile is None:
        bt = _pick_batch_tile(batch, tile_bytes, _OUT_BLOCK_BUDGET) \
            if tile_bytes < _OUT_BLOCK_BUDGET // 2 else 1
    else:
        bt = b_tile
    assert batch % bt == 0

    n_s, n_d, n_b = seq // ts, d_model // td, batch // bt

    if bt == 1:
        # Squeeze the size-1 batch dim out of the store path: straight vld/vst,
        # no broadcast/relayout work in the kernel body.
        out_block = (pl.Squeezed(), ts, td)
    else:
        out_block = (bt, ts, td)

    return pl.pallas_call(
        _pos_embed_kernel,
        out_shape=jax.ShapeDtypeStruct((batch, seq, d_model), w_pos.dtype),
        grid_spec=pltpu.PrefetchScalarGridSpec(
            num_scalar_prefetch=0,
            # batch innermost: the W tile index is constant across consecutive
            # steps, so Pallas skips re-fetching it -> table read once per tile.
            grid=(n_s, n_d, n_b),
            in_specs=[pl.BlockSpec((ts, td), lambda s, d, b: (s, d))],
            out_specs=pl.BlockSpec(out_block, lambda s, d, b: (b, s, d)),
        ),
        compiler_params=pltpu.CompilerParams(
            # All axes independent (no reduction) -> all parallel; lets v7x's
            # two TensorCores split the work. Neutral on v5e/v6e.
            dimension_semantics=("parallel", "parallel", "parallel"),
            vmem_limit_bytes=_VMEM_LIMIT,
        ),
        cost_estimate=cost,
    )(w_in)


if __name__ == "__main__":
    key = jax.random.PRNGKey(0)
    k_w, k_tok, k_w2 = jax.random.split(key, 3)

    # Small config consistent with the module (scaled-down Config fields).
    batch, seq, n_ctx, d_model, init_range = 2, 8, 16, 32, 0.02

    # Deterministic parameter init mirroring nn.init.normal_(W_pos, std=init_range).
    W_pos = init_range * jax.random.normal(k_w, (n_ctx, d_model), dtype=jnp.float32)
    # Token ids: only their shape matters for this module.
    tokens = jax.random.randint(k_tok, (batch, seq), 0, 100, dtype=jnp.int32)

    ref = jnp.broadcast_to(W_pos[:seq, :][None, :, :], (batch, seq, d_model))
    out = jax.block_until_ready(pos_embed(tokens, W_pos))   # exercises the flattened lane-dense path
    assert out.shape == (batch, seq, d_model)
    assert out.dtype == jnp.float32
    assert jnp.allclose(out, ref)

    # Lane-aligned d_model exercises the 3-D tiled path (unsliced table, packed batch).
    d_model2 = 128
    W_pos2 = init_range * jax.random.normal(k_w2, (n_ctx, d_model2), dtype=jnp.float32)
    ref2 = jnp.broadcast_to(W_pos2[:seq, :][None, :, :], (batch, seq, d_model2))
    out2 = jax.block_until_ready(pos_embed(tokens, W_pos2))
    assert jnp.allclose(out2, ref2)

    # Squeezed-batch (b_tile=1) store path.
    out2s = jax.block_until_ready(pos_embed(tokens, W_pos2, b_tile=1))
    assert jnp.allclose(out2s, ref2)

    print("KERNEL_OK")
</pallas_src>

<mosaic_0001>
module attributes {stable_mosaic.version = 11 : i64} {
  func.func @_pos_embed_kernel(%arg0: i32, %arg1: memref<1x256xf32, #tpu.memory_space<vmem>>, %arg2: memref<2x1x256xf32, #tpu.memory_space<vmem>>) attributes {dimension_semantics = [#tpu.dimension_semantics<parallel>], iteration_bounds = array<i64: 1>, scalar_prefetch = 0 : i64, scratch_operands = 0 : i64, tpu.core_type = #tpu.core_type<tc>, window_params = [{transform_indices = @transform_0, window_bounds = array<i64: 1, 256>}, {transform_indices = @transform_1, window_bounds = array<i64: 2, 1, 256>}]} {
    %c0 = arith.constant 0 : index
    %c0_0 = arith.constant 0 : index
    %0 = vector.load %arg1[%c0, %c0_0] : memref<1x256xf32, #tpu.memory_space<vmem>>, vector<1x256xf32>
    %1 = vector.shape_cast %0 : vector<1x256xf32> to vector<1x1x256xf32>
    %2 = vector.shape_cast %1 : vector<1x1x256xf32> to vector<1x1x256xf32>
    %3 = vector.broadcast %2 : vector<1x1x256xf32> to vector<2x1x256xf32>
    %c0_1 = arith.constant 0 : index
    %c0_2 = arith.constant 0 : index
    %c0_3 = arith.constant 0 : index
    %4 = vector.load %arg2[%c0_1, %c0_2, %c0_3] : memref<2x1x256xf32, #tpu.memory_space<vmem>>, vector<2x1x256xf32>
    tpu.vector_store %arg2[%c0_1, %c0_2, %c0_3], %3 {strides = array<i32>} : memref<2x1x256xf32, #tpu.memory_space<vmem>>, vector<2x1x256xf32>,
    return
  }
  func.func @transform_0(%arg0: i32) -> (i32, i32) {
    %c0_i32 = arith.constant 0 : i32
    %c0_i32_0 = arith.constant 0 : i32
    %c0_i32_1 = arith.constant 0 : i32
    return %c0_i32, %c0_i32_0 : i32, i32
  }
  func.func @transform_1(%arg0: i32) -> (i32, i32, i32) {
    %c0_i32 = arith.constant 0 : i32
    %c0_i32_0 = arith.constant 0 : i32
    %c0_i32_1 = arith.constant 0 : i32
    return %arg0, %c0_i32, %c0_i32_0 : i32, i32, i32
  }
}

</mosaic_0001>

<llo_original>
// kernel: tpu_custom_call.1
$region0: #{tpu_custom_call.1}
  #allocation0 [shape = 'u32[]', space=smem, size = 0x4, offset = 0x4, fixed_abs, tag = 'smem constant byte address 0x4 - core index']
  #allocation1 [shape = 'u32[144,128]{1,0:T(1,128)}', space=vmem, size = 0x12000, scoped, tag = 'internal scratch']
  %s0 = inlined_call_operand.hbm [shape: f32[1,512], index: 0, kind: input, shape index: {}]
  %s1 = inlined_call_operand.hbm [shape: f32[2,1,256], index: 1, kind: output, shape index: {}]
  %s2 = sld [smem:[#allocation0]]
  $region18: #{tpu_custom_call.1} parent=0
    _
  %s4 = ssub.s32 1, %s2
  %s5 = scalar_select 0, %s4, %s2
  $region1: #{tpu_custom_call.1} parent=0
    #allocation2 [shape = 'u8[1024]{0}', space=vmem, size = 0x400, scoped, tag = 'input window, operand 0, single buffered']
    #allocation3 [shape = 's32[1]{0}', space=sflag, size = 0x4, scoped, tag = 'scoped memory for tpu_custom_call.1']
    #allocation4 [shape = 's32[1]{0}', space=sflag, size = 0x4, scoped, tag = 'scoped memory for tpu_custom_call.1']
    #allocation5 [shape = 'u8[2048]{0}', space=vmem, size = 0x800, scoped, tag = 'output window, operand 0, single buffered']
    %6 = vsyncpa [#allocation3], 0
    %7 = vsyncpa [#allocation4], 0
    // Predicated region
    $region2: #{tpu_custom_call.1} parent=1 // pred_check
      _
    $region3: #{tpu_custom_call.1} parent=1 // pred_check_branch
      %9 = sbr.rel (0) target = $region5
    $region4: #{tpu_custom_call.1} parent=1 // pred_region
      %s11 = ssub.s32 32, 32
      %12 = vsyncadd [#allocation3], %s11
      %s14 = sshll.u32 [#allocation2], 4
      %s15 = int_to_ptr.vmem [resolvable:$true] %s14
      %17 = dma.hbm_to_vmem [thread:$0]  %s0, 32, %s15, [#allocation3]
    $region5: #{tpu_custom_call.1} parent=1 // pred_fallthru
      _
    // Predicated region
    $region6: #{tpu_custom_call.1} parent=1 // pred_check
      _
    $region7: #{tpu_custom_call.1} parent=1 // pred_check_branch
      %19 = sbr.rel (0) target = $region9
    $region8: #{tpu_custom_call.1} parent=1 // pred_region
      %20 = dma.done [#allocation3], 32
    $region9: #{tpu_custom_call.1} parent=1 // pred_fallthru
      _
    %v21 = vld [vmem:[#allocation2] sm:$0x3]
    %v22 = vlaneseq
    %vm23 = vcmp.ge.s32.totalorder %v22, 0
    %vm24 = vcmp.lt.s32.totalorder %v22, 256
    %vm25 = vmand %vm23, %vm24
    %26 = vst.msk [vmem:[#allocation5] sm:$0x3] %vm25, %v21
    %27 = vst.msk [vmem:[#allocation5 + $0x2] sm:$0x3] %vm25, %v21
    // Predicated region
    $region10: #{tpu_custom_call.1} parent=1 // pred_check
      _
    $region11: #{tpu_custom_call.1} parent=1 // pred_check_branch
      %29 = sbr.rel (0) target = $region13
    $region12: #{tpu_custom_call.1} parent=1 // pred_region
      %s31 = ssub.s32 64, 64
      %32 = vsyncadd [#allocation4], %s31
      %s33 = sshll.u32 [#allocation5], 4
      %s34 = int_to_ptr.vmem [resolvable:$true] %s33
      %39 = dma.vmem_to_hbm [thread:$0]  %s34, 64, %s1, [#allocation4], 32, 32, 2
    $region13: #{tpu_custom_call.1} parent=1 // pred_fallthru
      _
    // Predicated region
    $region14: #{tpu_custom_call.1} parent=1 // pred_check
      _
    $region15: #{tpu_custom_call.1} parent=1 // pred_check_branch
      %41 = sbr.rel (0) target = $region17
    $region16: #{tpu_custom_call.1} parent=1 // pred_region
      %42 = dma.done [#allocation4], 64
    $region17: #{tpu_custom_call.1} parent=1 // pred_fallthru
      _
    %43 = vsyncpa [#allocation3], 1
    %44 = vsyncpa [#allocation4], 1

</llo_original>
